<compile_context>
chip_gen: v7x
topology: tpu7x:2x2x1
jax: 0.10.0
libtpu: 0.0.40
codegen_flags: <defaults>
</compile_context>

<pallas_src>
import jax
import jax.numpy as jnp
from jax.experimental import pallas as pl
from jax.experimental.pallas import tpu as pltpu


def _copy_kernel(x_ref, o_ref):
    # Straight lane-dense tile copy: one DMA in, one DMA out per grid step.
    o_ref[...] = x_ref[...]


def _lane_dense_copy(flat, *, target_tile_bytes=1 << 20):
    """Copy a 1-D contiguous array through a tiled, lane-dense Pallas kernel.

    The array is viewed as (rows, lane) with `lane` a large multiple of 128 so
    stores lower to unmasked `vst` (no masked partial stores), and rows are
    tiled into ~1 MiB blocks so the working set stays far below scoped VMEM on
    all generations while each DMA is large enough to sit near the HBM roofline.
    """
    total = flat.shape[0]
    lane = None
    for cand in (1024, 512, 256, 128):
        if total % cand == 0:
            lane = cand
            break
    if lane is None:
        # TODO(synk): element count not a multiple of 128 -> no lane-dense view;
        # the op is a pure metadata reshape anyway, so just return it untouched.
        return flat

    rows = total // lane
    x2 = flat.reshape(rows, lane)
    itemsize = jnp.dtype(flat.dtype).itemsize

    if rows <= 8:
        # Full-extent block satisfies the (8,128) block-shape constraint.
        block_rows = rows
    else:
        target_rows = max(8, target_tile_bytes // (lane * itemsize))
        block_rows = min((target_rows // 8) * 8, (rows // 8) * 8)
        block_rows = max(8, block_rows)

    out = pl.pallas_call(
        _copy_kernel,
        out_shape=jax.ShapeDtypeStruct((rows, lane), flat.dtype),
        grid=(pl.cdiv(rows, block_rows),),
        in_specs=[pl.BlockSpec((block_rows, lane), lambda r: (r, 0))],
        out_specs=pl.BlockSpec((block_rows, lane), lambda r: (r, 0)),
        compiler_params=pltpu.CompilerParams(
            # Parallel outer axis: sharded across the 2 TensorCores on v7x,
            # no-op (and harmless) on single-TC v5e/v6e.
            dimension_semantics=("parallel",)),
    )(x2)
    return out.reshape(total)


class PatchUnEmbed:
    """JAX/Pallas port of basicsr ShiftViT PatchUnEmbed (no parameters)."""

    def __init__(self, img_size=224, patch_size=4, in_chans=3, embed_dim=96,
                 norm_layer=None):
        img_size = (img_size, img_size) if isinstance(img_size, int) else tuple(img_size)
        patch_size = (patch_size, patch_size) if isinstance(patch_size, int) else tuple(patch_size)
        self.img_size = img_size
        self.patch_size = patch_size
        self.patches_resolution = [img_size[0] // patch_size[0],
                                   img_size[1] // patch_size[1]]
        self.num_patches = self.patches_resolution[0] * self.patches_resolution[1]
        self.in_chans = in_chans
        self.embed_dim = embed_dim
        # No parameters to initialize.

    def __call__(self, x, x_size):
        """x: (B, embed_dim, H*W)  ->  (B, embed_dim, H, W)"""
        B = x.shape[0]
        C = self.embed_dim
        H, W = int(x_size[0]), int(x_size[1])  # must be static Python ints
        # torch's .view() is a zero-copy contiguous reshape; the only possible
        # work is data movement, done as a lane-dense tiled Pallas copy.
        flat = _lane_dense_copy(x.reshape(-1))
        return flat.reshape(B, C, H, W)


if __name__ == "__main__":
    key = jax.random.PRNGKey(0)

    # Case 1: small canonical shapes (batch=2, embed_dim=32, 8x8 feature map).
    B, C, H, W = 2, 32, 8, 8
    module = PatchUnEmbed(img_size=32, patch_size=4, in_chans=3, embed_dim=C)
    x = jax.random.normal(key, (B, C, H * W), dtype=jnp.float32)
    y = jax.block_until_ready(module(x, (H, W)))
    ref = x.reshape(B, C, H, W)
    assert y.shape == (B, C, H, W), y.shape
    assert y.dtype == x.dtype
    assert jnp.array_equal(y, ref)

    # Case 2: uneven row count -> exercises multi-step grid with a partial
    # (masked) final block while staying lane-dense.
    B2, C2, H2, W2 = 2, 96, 12, 12
    module2 = PatchUnEmbed(img_size=48, patch_size=4, in_chans=3, embed_dim=C2)
    x2 = jax.random.normal(jax.random.PRNGKey(0), (B2, C2, H2 * W2), dtype=jnp.float32)
    y2 = jax.block_until_ready(module2(x2, (H2, W2)))
    assert jnp.array_equal(y2, x2.reshape(B2, C2, H2, W2))

    print("KERNEL_OK")
</pallas_src>

<mosaic_0001>
module attributes {stable_mosaic.version = 11 : i64} {
  func.func @_copy_kernel(%arg0: i32, %arg1: memref<4x1024xf32, #tpu.memory_space<vmem>>, %arg2: memref<4x1024xf32, #tpu.memory_space<vmem>>) attributes {dimension_semantics = [#tpu.dimension_semantics<parallel>], iteration_bounds = array<i64: 1>, scalar_prefetch = 0 : i64, scratch_operands = 0 : i64, tpu.core_type = #tpu.core_type<tc>, window_params = [{transform_indices = @transform_0, window_bounds = array<i64: 4, 1024>}, {transform_indices = @transform_1, window_bounds = array<i64: 4, 1024>}]} {
    %c0 = arith.constant 0 : index
    %c0_0 = arith.constant 0 : index
    %0 = vector.load %arg1[%c0, %c0_0] : memref<4x1024xf32, #tpu.memory_space<vmem>>, vector<4x1024xf32>
    %c0_1 = arith.constant 0 : index
    %c0_2 = arith.constant 0 : index
    %1 = vector.load %arg2[%c0_1, %c0_2] : memref<4x1024xf32, #tpu.memory_space<vmem>>, vector<4x1024xf32>
    tpu.vector_store %arg2[%c0_1, %c0_2], %0 {strides = array<i32>} : memref<4x1024xf32, #tpu.memory_space<vmem>>, vector<4x1024xf32>,
    return
  }
  func.func @transform_0(%arg0: i32) -> (i32, i32) {
    %c0_i32 = arith.constant 0 : i32
    %c0_i32_0 = arith.constant 0 : i32
    return %arg0, %c0_i32 : i32, i32
  }
  func.func @transform_1(%arg0: i32) -> (i32, i32) {
    %c0_i32 = arith.constant 0 : i32
    %c0_i32_0 = arith.constant 0 : i32
    return %arg0, %c0_i32 : i32, i32
  }
}

</mosaic_0001>

<llo_original>
// kernel: tpu_custom_call.1
$region0: #{tpu_custom_call.1}
  #allocation0 [shape = 'u32[]', space=smem, size = 0x4, offset = 0x4, fixed_abs, tag = 'smem constant byte address 0x4 - core index']
  #allocation1 [shape = 'u32[144,128]{1,0:T(1,128)}', space=vmem, size = 0x12000, scoped, tag = 'internal scratch']
  %s0 = inlined_call_operand.hbm [shape: f32[4,1024], index: 0, kind: input, shape index: {}]
  %s1 = inlined_call_operand.hbm [shape: f32[4,1024], index: 1, kind: output, shape index: {}]
  %s2 = sld [smem:[#allocation0]]
  $region18: #{tpu_custom_call.1} parent=0
    _
  %s4 = ssub.s32 1, %s2
  %s5 = scalar_select 0, %s4, %s2
  $region1: #{tpu_custom_call.1} parent=0
    #allocation2 [shape = 'u8[16384]{0}', space=vmem, size = 0x4000, scoped, tag = 'input window, operand 0, single buffered']
    #allocation3 [shape = 's32[1]{0}', space=sflag, size = 0x4, scoped, tag = 'scoped memory for tpu_custom_call.1']
    #allocation4 [shape = 's32[1]{0}', space=sflag, size = 0x4, scoped, tag = 'scoped memory for tpu_custom_call.1']
    #allocation5 [shape = 'u8[16384]{0}', space=vmem, size = 0x4000, scoped, tag = 'output window, operand 0, single buffered']
    %6 = vsyncpa [#allocation3], 0
    %7 = vsyncpa [#allocation4], 0
    // Predicated region
    $region2: #{tpu_custom_call.1} parent=1 // pred_check
      _
    $region3: #{tpu_custom_call.1} parent=1 // pred_check_branch
      %9 = sbr.rel (0) target = $region5
    $region4: #{tpu_custom_call.1} parent=1 // pred_region
      %s11 = ssub.s32 512, 512
      %12 = vsyncadd [#allocation3], %s11
      %s14 = sshll.u32 [#allocation2], 4
      %s15 = int_to_ptr.vmem [resolvable:$true] %s14
      %17 = dma.hbm_to_vmem [thread:$0]  %s0, 512, %s15, [#allocation3]
    $region5: #{tpu_custom_call.1} parent=1 // pred_fallthru
      _
    // Predicated region
    $region6: #{tpu_custom_call.1} parent=1 // pred_check
      _
    $region7: #{tpu_custom_call.1} parent=1 // pred_check_branch
      %19 = sbr.rel (0) target = $region9
    $region8: #{tpu_custom_call.1} parent=1 // pred_region
      %20 = dma.done [#allocation3], 512
    $region9: #{tpu_custom_call.1} parent=1 // pred_fallthru
      _
    %v21 = vld [vmem:[#allocation2] sm:$0xff]
    %v22 = vld [vmem:[#allocation2 + $0x8] sm:$0xff]
    %v23 = vld [vmem:[#allocation2 + $0x10] sm:$0xff]
    %v24 = vld [vmem:[#allocation2 + $0x18] sm:$0xff]
    %25 = vst [vmem:[#allocation5] sm:$0xff] %v21
    %26 = vst [vmem:[#allocation5 + $0x8] sm:$0xff] %v22
    %27 = vst [vmem:[#allocation5 + $0x10] sm:$0xff] %v23
    %28 = vst [vmem:[#allocation5 + $0x18] sm:$0xff] %v24
    // Predicated region
    $region10: #{tpu_custom_call.1} parent=1 // pred_check
      _
    $region11: #{tpu_custom_call.1} parent=1 // pred_check_branch
      %30 = sbr.rel (0) target = $region13
    $region12: #{tpu_custom_call.1} parent=1 // pred_region
      %s32 = ssub.s32 512, 512
      %33 = vsyncadd [#allocation4], %s32
      %s35 = sshll.u32 [#allocation5], 4
      %s36 = int_to_ptr.vmem [resolvable:$true] %s35
      %38 = dma.vmem_to_hbm [thread:$0]  %s36, 512, %s1, [#allocation4]
    $region13: #{tpu_custom_call.1} parent=1 // pred_fallthru
      _
    // Predicated region
    $region14: #{tpu_custom_call.1} parent=1 // pred_check
      _
    $region15: #{tpu_custom_call.1} parent=1 // pred_check_branch
      %40 = sbr.rel (0) target = $region17
    $region16: #{tpu_custom_call.1} parent=1 // pred_region
      %41 = dma.done [#allocation4], 512
    $region17: #{tpu_custom_call.1} parent=1 // pred_fallthru
      _
    %42 = vsyncpa [#allocation3], 1
    %43 = vsyncpa [#allocation4], 1

</llo_original>
